<compile_context>
chip_gen: v7x
topology: tpu7x:2x2x1
jax: 0.10.0
libtpu: 0.0.40
codegen_flags: <defaults>
</compile_context>

<pallas_src>
import functools

import jax
import jax.numpy as jnp
from jax.experimental import pallas as pl
from jax.experimental.pallas import tpu as pltpu


_HALO = 128  # halo block width; covers (K-1)*dilation <= 128 extra input columns


def _round_up(x, m):
    return ((x + m - 1) // m) * m


def _cdiv(a, b):
    return -(-a // b)


def _physical_vmem_bytes(default=128 << 20):
    try:
        return int(pltpu.get_tpu_info().vmem_capacity_bytes)
    except Exception:
        return default


# ----------------------------------------------------------------------------- pass 1
def _conv_stats_kernel(x_ref, xh_ref, w_ref, conv_ref, sum_ref, sq_ref,
                       *, K, dilation, L_out, n_l_half):
    """Conv tile via K shifted MXU matmuls (f32 accumulation).

    Stores the tile in the intermediate dtype in (C_out, L) layout (lane dense) and accumulates
    per-channel sum / sum-of-squares in f32 into this core's resident (C_out_p, 1) stats blocks.
    """
    c = pl.program_id(0)      # TensorCore split       ("parallel")
    n = pl.program_id(1)      # batch                  ("arbitrary")
    li = pl.program_id(2)     # L tile within the core ("arbitrary")
    _, tl = conv_ref.shape

    @pl.when(jnp.logical_and(n == 0, li == 0))
    def _():
        sum_ref[...] = jnp.zeros_like(sum_ref)
        sq_ref[...] = jnp.zeros_like(sq_ref)

    # Current tile plus the 128-column halo from the next tile: (C_in_p, tl + 128).
    x_cat = jnp.concatenate([x_ref[...], xh_ref[...]], axis=-1)

    acc = jnp.dot(w_ref[0], x_cat[:, :tl], preferred_element_type=jnp.float32)
    for k in range(1, K):
        o = k * dilation
        acc = acc + jnp.dot(w_ref[k], x_cat[:, o:o + tl],
                            preferred_element_type=jnp.float32)

    # Columns >= L_out (L padding) can alias real samples through the shifted taps:
    # zero them so neither the stored tile nor the statistics see them.
    l0 = (c * n_l_half + li) * tl
    col = l0 + jax.lax.broadcasted_iota(jnp.int32, (1, tl), 1)
    conv = jnp.where(col < L_out, acc, 0.0)

    conv_ref[...] = conv.astype(conv_ref.dtype)            # bf16 intermediate by default
    sum_ref[...] += jnp.sum(conv, axis=1, keepdims=True)   # stats from the f32 values
    sq_ref[...] += jnp.sum(conv * conv, axis=1, keepdims=True)


# ----------------------------------------------------------------------------- pass 2
def _bn_relu_kernel(conv_ref, scale_ref, shift_ref, out_ref):
    """y = conv * scale + shift (BN folded into one FMA), then ReLU.  NCL layout, lane dense."""
    y = conv_ref[...].astype(jnp.float32) * scale_ref[...] + shift_ref[...]
    out_ref[...] = jnp.maximum(y, 0.0)


# ----------------------------------------------------------------------------- wrapper
def conv_bn_relu_1d(x, weight, gamma, beta, *, stride=1, pad=1, dilation=1,
                    eps=1e-5, matmul_dtype=jnp.bfloat16):
    """x: (N, C_in, L), weight: (C_out, C_in, K), gamma/beta: (C_out,) -> (N, C_out, L_out).

    Conv1d (no bias) + BatchNorm1d (training-mode batch statistics) + ReLU.
    """
    if stride != 1:
        # TODO(synk): stride > 1 needs strided tap loads (pl.ds(start, tl, stride=s)); not wired up.
        raise NotImplementedError("Pallas ConvBnReLU1D path currently supports stride == 1 only")
    N, C_in, L = x.shape
    C_out, _, K = weight.shape
    assert (K - 1) * dilation <= _HALO, "halo block only covers (K-1)*dilation <= 128"
    L_out = L + 2 * pad - dilation * (K - 1)
    assert L_out >= 1, "output length must be positive"

    # --- alignment & L tiling ------------------------------------------------
    C_in_p = _round_up(C_in, 16)      # sublane / bf16-packing friendly
    C_out_p = _round_up(C_out, 16)

    # Pick the pass-1 L tile from a small candidate set minimizing padded columns (mild
    # preference for fewer, larger grid steps).  NC=2 splits the L tiles across the two v7x
    # TensorCores; on single-core chips (v5e/v6e) that axis simply iterates.
    cap = _round_up(L_out, 128)
    best = None
    for tl_c in sorted({min(c, cap) for c in (128, 256, 512, 1024, 2048)}):
        n_l = _cdiv(L_out, tl_c)
        nc = 2 if n_l >= 2 else 1
        half = _cdiv(n_l, nc)
        cost = nc * half * tl_c + 256 * nc * half
        if best is None or cost <= best[0]:
            best = (cost, tl_c, nc, half)
    _, tl, NC, n_l_half = best
    L_out_p = NC * n_l_half * tl
    L_x_p = L_out_p + tl              # room for the halo block of the last tile

    # Pass-2 L tile: a larger multiple of tl that still divides L_out_p (amortizes the
    # per-grid-step overhead of the pure FMA+ReLU epilogue).
    f = 1
    while (NC * n_l_half) % (2 * f) == 0 and tl * 2 * f <= 2048:
        f *= 2
    tl2 = tl * f
    n_l2 = L_out_p // tl2

    # --- operand prep (no im2col: just zero padding / channel alignment) -----
    xp = jnp.pad(x, ((0, 0), (0, C_in_p - C_in), (pad, L_x_p - L - pad))).astype(matmul_dtype)
    w_taps = jnp.pad(weight.transpose(2, 0, 1),
                     ((0, 0), (0, C_out_p - C_out), (0, C_in_p - C_in))).astype(matmul_dtype)
    gamma_c = jnp.pad(gamma.astype(jnp.float32), (0, C_out_p - C_out)).reshape(C_out_p, 1)
    beta_c = jnp.pad(beta.astype(jnp.float32), (0, C_out_p - C_out)).reshape(C_out_p, 1)

    # --- VMEM budget derived from the chip (stays below physical on v7x) -----
    bpe = jnp.dtype(matmul_dtype).itemsize
    vmem_p1 = (2 * C_in_p * (tl + _HALO) * bpe       # x tile + halo (double buffered)
               + 2 * K * C_out_p * C_in_p * bpe      # resident weight taps
               + 2 * C_out_p * tl * bpe              # conv tile out
               + C_in_p * (tl + _HALO) * bpe         # x_cat temp
               + 2 * C_out_p * tl * 4                # f32 accumulator / masked copy
               + 8 * C_out_p * 4)                    # stats blocks
    vmem_p2 = 2 * C_out_p * tl2 * (bpe + 4) + 8 * C_out_p * 4
    phys = _physical_vmem_bytes()
    vmem_limit = max(32 << 20, min(2 * max(vmem_p1, vmem_p2) + (8 << 20), phys - (16 << 20)))

    cp1 = pltpu.CompilerParams(
        dimension_semantics=("parallel", "arbitrary", "arbitrary"),
        vmem_limit_bytes=vmem_limit)
    cp2 = pltpu.CompilerParams(
        dimension_semantics=("parallel", "parallel"),
        vmem_limit_bytes=vmem_limit)

    # --- pass 1: conv (K shifted matmuls) + per-core batch statistics --------
    kern1 = functools.partial(_conv_stats_kernel, K=K, dilation=dilation,
                              L_out=L_out, n_l_half=n_l_half)
    conv, s1, s2 = pl.pallas_call(
        kern1,
        out_shape=(jax.ShapeDtypeStruct((N, C_out_p, L_out_p), matmul_dtype),
                   jax.ShapeDtypeStruct((NC, C_out_p, 1), jnp.float32),
                   jax.ShapeDtypeStruct((NC, C_out_p, 1), jnp.float32)),
        grid=(NC, N, n_l_half),
        in_specs=[
            pl.BlockSpec((None, C_in_p, tl),
                         lambda c, n, l: (n, 0, c * n_l_half + l)),
            pl.BlockSpec((None, C_in_p, _HALO),                      # halo: next 128 columns
                         lambda c, n, l: (n, 0, (c * n_l_half + l + 1) * (tl // _HALO))),
            pl.BlockSpec((K, C_out_p, C_in_p), lambda c, n, l: (0, 0, 0)),
        ],
        out_specs=(
            pl.BlockSpec((None, C_out_p, tl),
                         lambda c, n, l: (n, 0, c * n_l_half + l)),
            pl.BlockSpec((None, C_out_p, 1), lambda c, n, l: (c, 0, 0)),
            pl.BlockSpec((None, C_out_p, 1), lambda c, n, l: (c, 0, 0)),
        ),
        compiler_params=cp1,
    )(xp, xp, w_taps)

    # --- tiny per-channel BN math (hoisted out of the per-tile loops) --------
    count = jnp.float32(N * L_out)
    s1 = jnp.sum(s1, axis=0)                       # reduce the per-core partials
    s2 = jnp.sum(s2, axis=0)
    mean = s1 / count
    # TODO(synk): E[x^2]-E[x]^2 in f32 can cancel badly for very large channel means; a centered
    # second pass would be safer if such inputs are expected.
    var = jnp.maximum(s2 / count - mean * mean, 0.0)
    inv = jax.lax.rsqrt(var + jnp.float32(eps))
    scale = inv * gamma_c                          # (C_out_p, 1)
    shift = beta_c - mean * scale

    # --- pass 2: fused scale/shift + ReLU, fully parallel, NCL layout --------
    out = pl.pallas_call(
        _bn_relu_kernel,
        out_shape=jax.ShapeDtypeStruct((N, C_out_p, L_out_p), jnp.float32),
        grid=(N, n_l2),
        in_specs=[
            pl.BlockSpec((None, C_out_p, tl2), lambda n, l: (n, 0, l)),
            pl.BlockSpec((C_out_p, 1), lambda n, l: (0, 0)),
            pl.BlockSpec((C_out_p, 1), lambda n, l: (0, 0)),
        ],
        out_specs=pl.BlockSpec((None, C_out_p, tl2), lambda n, l: (n, 0, l)),
        compiler_params=cp2,
    )(conv, scale, shift)

    return out[:, :C_out, :L_out]


# ----------------------------------------------------------------------------- reference / test
def _reference(x, weight, gamma, beta, *, pad=1, dilation=1, eps=1e-5):
    """Pure-JAX reference matching PyTorch ConvBnReLU1D in training mode (stride=1)."""
    y = jax.lax.conv_general_dilated(
        x, weight, window_strides=(1,), padding=((pad, pad),),
        rhs_dilation=(dilation,), dimension_numbers=("NCH", "OIH", "NCH"))
    mean = y.mean(axis=(0, 2), keepdims=True)
    var = ((y - mean) ** 2).mean(axis=(0, 2), keepdims=True)   # biased, BN train mode
    yn = (y - mean) / jnp.sqrt(var + eps) * gamma.reshape(1, -1, 1) + beta.reshape(1, -1, 1)
    return jnp.maximum(yn, 0.0)


if __name__ == "__main__":
    root = jax.random.PRNGKey(0)

    def run_case(seed, N, C_in, C_out, L, K, pad, dilation, matmul_dtype, atol):
        kx, kw, kg, kb = jax.random.split(jax.random.fold_in(root, seed), 4)
        x = jax.random.normal(kx, (N, C_in, L), dtype=jnp.float32)
        w = 0.1 * jax.random.normal(kw, (C_out, C_in, K), dtype=jnp.float32)
        gamma = 1.0 + 0.1 * jax.random.normal(kg, (C_out,), dtype=jnp.float32)
        beta = 0.1 * jax.random.normal(kb, (C_out,), dtype=jnp.float32)

        out = conv_bn_relu_1d(x, w, gamma, beta, pad=pad, dilation=dilation,
                              matmul_dtype=matmul_dtype)
        out = jax.block_until_ready(out)
        ref = _reference(x, w, gamma, beta, pad=pad, dilation=dilation)
        L_out = L + 2 * pad - dilation * (K - 1)
        assert out.shape == (N, C_out, L_out), (out.shape, (N, C_out, L_out))
        err = float(jnp.abs(out - ref).max())
        assert jnp.allclose(out, ref, atol=atol, rtol=atol), (seed, err)

    # Module defaults (kernel_size=3, stride=1, pad=1, dilation=1) at a tiny shape.
    run_case(0, N=2, C_in=4, C_out=8, L=16, K=3, pad=1, dilation=1,
             matmul_dtype=jnp.float32, atol=1e-4)
    run_case(1, N=2, C_in=4, C_out=8, L=16, K=3, pad=1, dilation=1,
             matmul_dtype=jnp.bfloat16, atol=3e-2)     # default bf16 MXU / bf16 intermediate path
    # Dilated / wider-padding variant of the same module.
    run_case(2, N=2, C_in=4, C_out=8, L=32, K=3, pad=2, dilation=2,
             matmul_dtype=jnp.float32, atol=1e-4)
    # Multi-tile case: exercises the 2-way core split, halo reads and L-padding mask.
    run_case(3, N=2, C_in=8, C_out=16, L=2500, K=3, pad=1, dilation=1,
             matmul_dtype=jnp.float32, atol=1e-3)

    print("KERNEL_OK")
</pallas_src>

<mosaic_0001>
module attributes {stable_mosaic.version = 11 : i64} {
  func.func @_conv_stats_kernel(%arg0: i32, %arg1: i32, %arg2: i32, %arg3: memref<1x16x128xf32, #tpu.memory_space<vmem>>, %arg4: memref<1x16x128xf32, #tpu.memory_space<vmem>>, %arg5: memref<3x16x16xf32, #tpu.memory_space<vmem>>, %arg6: memref<1x16x128xf32, #tpu.memory_space<vmem>>, %arg7: memref<1x16x1xf32, #tpu.memory_space<vmem>>, %arg8: memref<1x16x1xf32, #tpu.memory_space<vmem>>) attributes {dimension_semantics = [#tpu.dimension_semantics<parallel>, #tpu.dimension_semantics<arbitrary>, #tpu.dimension_semantics<arbitrary>], iteration_bounds = array<i64: 1, 2, 1>, scalar_prefetch = 0 : i64, scratch_operands = 0 : i64, tpu.core_type = #tpu.core_type<tc>, window_params = [{transform_indices = @transform_0, window_bounds = array<i64: 1, 16, 128>}, {transform_indices = @transform_1, window_bounds = array<i64: 1, 16, 128>}, {pipeline_mode = #tpu.pipeline_mode<synchronous>, transform_indices = @transform_2, window_bounds = array<i64: 3, 16, 16>}, {transform_indices = @transform_3, window_bounds = array<i64: 1, 16, 128>}, {transform_indices = @transform_4, window_bounds = array<i64: 1, 16, 1>}, {transform_indices = @transform_5, window_bounds = array<i64: 1, 16, 1>}]} {
    %c0_i32 = arith.constant 0 : i32
    %0 = arith.cmpi eq, %arg1, %c0_i32 : i32
    %c0_i32_0 = arith.constant 0 : i32
    %1 = arith.cmpi eq, %arg2, %c0_i32_0 : i32
    %2 = arith.andi %0, %1 : i1
    %3 = arith.extui %2 : i1 to i32
    %c0_i32_1 = arith.constant 0 : i32
    %4 = arith.cmpi ne, %3, %c0_i32_1 : i32
    scf.if %4 {
      %cst_34 = arith.constant 0.000000e+00 : f32
      %56 = vector.broadcast %cst_34 : f32 to vector<16x1xf32>
      %c0_35 = arith.constant 0 : index
      %c0_36 = arith.constant 0 : index
      %c0_37 = arith.constant 0 : index
      %57 = vector.load %arg7[%c0_35, %c0_36, %c0_37] : memref<1x16x1xf32, #tpu.memory_space<vmem>>, vector<1x16x1xf32>
      %58 = vector.shape_cast %57 : vector<1x16x1xf32> to vector<16x1xf32>
      %59 = vector.shape_cast %56 : vector<16x1xf32> to vector<1x16x1xf32>
      tpu.vector_store %arg7[%c0_35, %c0_36, %c0_37], %59 {strides = array<i32>} : memref<1x16x1xf32, #tpu.memory_space<vmem>>, vector<1x16x1xf32>,
      %cst_38 = arith.constant 0.000000e+00 : f32
      %60 = vector.broadcast %cst_38 : f32 to vector<16x1xf32>
      %c0_39 = arith.constant 0 : index
      %c0_40 = arith.constant 0 : index
      %c0_41 = arith.constant 0 : index
      %61 = vector.load %arg8[%c0_39, %c0_40, %c0_41] : memref<1x16x1xf32, #tpu.memory_space<vmem>>, vector<1x16x1xf32>
      %62 = vector.shape_cast %61 : vector<1x16x1xf32> to vector<16x1xf32>
      %63 = vector.shape_cast %60 : vector<16x1xf32> to vector<1x16x1xf32>
      tpu.vector_store %arg8[%c0_39, %c0_40, %c0_41], %63 {strides = array<i32>} : memref<1x16x1xf32, #tpu.memory_space<vmem>>, vector<1x16x1xf32>,
    } else {
    }
    %c0 = arith.constant 0 : index
    %c0_2 = arith.constant 0 : index
    %c0_3 = arith.constant 0 : index
    %5 = vector.load %arg3[%c0, %c0_2, %c0_3] : memref<1x16x128xf32, #tpu.memory_space<vmem>>, vector<1x16x128xf32>
    %6 = vector.shape_cast %5 : vector<1x16x128xf32> to vector<16x128xf32>
    %c0_4 = arith.constant 0 : index
    %c0_5 = arith.constant 0 : index
    %c0_6 = arith.constant 0 : index
    %7 = vector.load %arg4[%c0_4, %c0_5, %c0_6] : memref<1x16x128xf32, #tpu.memory_space<vmem>>, vector<1x16x128xf32>
    %8 = vector.shape_cast %7 : vector<1x16x128xf32> to vector<16x128xf32>
    %9 = tpu.concatenate %6, %8 in 1 : vector<16x128xf32>, vector<16x128xf32> -> vector<16x256xf32>
    %c0_7 = arith.constant 0 : index
    %c0_8 = arith.constant 0 : index
    %c0_9 = arith.constant 0 : index
    %10 = vector.load %arg5[%c0_7, %c0_8, %c0_9] : memref<3x16x16xf32, #tpu.memory_space<vmem>>, vector<1x16x16xf32>
    %11 = vector.shape_cast %10 : vector<1x16x16xf32> to vector<16x16xf32>
    %12 = vector.extract_strided_slice %9 {offsets = [0, 0], sizes = [16, 128], strides = [1, 1]} : vector<16x256xf32> to vector<16x128xf32>
    %cst = arith.constant dense<0.000000e+00> : vector<16x128xf32>
    %13 = tpu.matmul %11, %12, %cst {dimension_numbers = #tpu.dot_dimension_numbers<[1], [0], [0], [1], [0, 0, 1, 1], [], []>} : vector<16x16xf32>, vector<16x128xf32>, vector<16x128xf32> -> vector<16x128xf32>
    %c1 = arith.constant 1 : index
    %c0_10 = arith.constant 0 : index
    %c0_11 = arith.constant 0 : index
    %14 = vector.load %arg5[%c1, %c0_10, %c0_11] : memref<3x16x16xf32, #tpu.memory_space<vmem>>, vector<1x16x16xf32>
    %15 = vector.shape_cast %14 : vector<1x16x16xf32> to vector<16x16xf32>
    %16 = vector.extract_strided_slice %9 {offsets = [0, 1], sizes = [16, 128], strides = [1, 1]} : vector<16x256xf32> to vector<16x128xf32>
    %cst_12 = arith.constant dense<0.000000e+00> : vector<16x128xf32>
    %17 = tpu.matmul %15, %16, %cst_12 {dimension_numbers = #tpu.dot_dimension_numbers<[1], [0], [0], [1], [0, 0, 1, 1], [], []>} : vector<16x16xf32>, vector<16x128xf32>, vector<16x128xf32> -> vector<16x128xf32>
    %18 = arith.addf %13, %17 : vector<16x128xf32>
    %c2 = arith.constant 2 : index
    %c0_13 = arith.constant 0 : index
    %c0_14 = arith.constant 0 : index
    %19 = vector.load %arg5[%c2, %c0_13, %c0_14] : memref<3x16x16xf32, #tpu.memory_space<vmem>>, vector<1x16x16xf32>
    %20 = vector.shape_cast %19 : vector<1x16x16xf32> to vector<16x16xf32>
    %21 = vector.extract_strided_slice %9 {offsets = [0, 2], sizes = [16, 128], strides = [1, 1]} : vector<16x256xf32> to vector<16x128xf32>
    %cst_15 = arith.constant dense<0.000000e+00> : vector<16x128xf32>
    %22 = tpu.matmul %20, %21, %cst_15 {dimension_numbers = #tpu.dot_dimension_numbers<[1], [0], [0], [1], [0, 0, 1, 1], [], []>} : vector<16x16xf32>, vector<16x128xf32>, vector<16x128xf32> -> vector<16x128xf32>
    %23 = arith.addf %18, %22 : vector<16x128xf32>
    %c1_i32 = arith.constant 1 : i32
    %24 = arith.muli %arg0, %c1_i32 : i32
    %25 = arith.addi %24, %arg2 : i32
    %c128_i32 = arith.constant 128 : i32
    %26 = arith.muli %25, %c128_i32 : i32
    %27 = tpu.iota {dimensions = array<i32: 1>} : vector<1x128xi32>
    %28 = vector.broadcast %26 : i32 to vector<1x128xi32>
    %29 = arith.addi %28, %27 : vector<1x128xi32>
    %c16_i32 = arith.constant 16 : i32
    %30 = vector.broadcast %c16_i32 : i32 to vector<1x128xi32>
    %31 = arith.cmpi slt, %29, %30 : vector<1x128xi32>
    %cst_16 = arith.constant 0.000000e+00 : f32
    %32 = vector.shape_cast %31 : vector<1x128xi1> to vector<1x128xi1>
    %33 = vector.broadcast %32 : vector<1x128xi1> to vector<16x128xi1>
    %34 = vector.broadcast %cst_16 : f32 to vector<16x128xf32>
    %35 = arith.select %33, %23, %34 : vector<16x128xi1>, vector<16x128xf32>
    %c0_17 = arith.constant 0 : index
    %c0_18 = arith.constant 0 : index
    %c0_19 = arith.constant 0 : index
    %36 = vector.load %arg6[%c0_17, %c0_18, %c0_19] : memref<1x16x128xf32, #tpu.memory_space<vmem>>, vector<1x16x128xf32>
    %37 = vector.shape_cast %36 : vector<1x16x128xf32> to vector<16x128xf32>
    %38 = vector.shape_cast %35 : vector<16x128xf32> to vector<1x16x128xf32>
    tpu.vector_store %arg6[%c0_17, %c0_18, %c0_19], %38 {strides = array<i32>} : memref<1x16x128xf32, #tpu.memory_space<vmem>>, vector<1x16x128xf32>,
    %c0_20 = arith.constant 0 : index
    %c0_21 = arith.constant 0 : index
    %c0_22 = arith.constant 0 : index
    %39 = vector.load %arg7[%c0_20, %c0_21, %c0_22] : memref<1x16x1xf32, #tpu.memory_space<vmem>>, vector<1x16x1xf32>
    %40 = vector.shape_cast %39 : vector<1x16x1xf32> to vector<16x1xf32>
    %cst_23 = arith.constant dense<0.000000e+00> : vector<16xf32>
    %41 = vector.multi_reduction <add>, %35, %cst_23 [1] : vector<16x128xf32> to vector<16xf32>
    %42 = vector.shape_cast %41 : vector<16xf32> to vector<16x1xf32>
    %43 = arith.addf %40, %42 : vector<16x1xf32>
    %c0_24 = arith.constant 0 : index
    %c0_25 = arith.constant 0 : index
    %c0_26 = arith.constant 0 : index
    %44 = vector.load %arg7[%c0_24, %c0_25, %c0_26] : memref<1x16x1xf32, #tpu.memory_space<vmem>>, vector<1x16x1xf32>
    %45 = vector.shape_cast %44 : vector<1x16x1xf32> to vector<16x1xf32>
    %46 = vector.shape_cast %43 : vector<16x1xf32> to vector<1x16x1xf32>
    tpu.vector_store %arg7[%c0_24, %c0_25, %c0_26], %46 {strides = array<i32>} : memref<1x16x1xf32, #tpu.memory_space<vmem>>, vector<1x16x1xf32>,
    %c0_27 = arith.constant 0 : index
    %c0_28 = arith.constant 0 : index
    %c0_29 = arith.constant 0 : index
    %47 = vector.load %arg8[%c0_27, %c0_28, %c0_29] : memref<1x16x1xf32, #tpu.memory_space<vmem>>, vector<1x16x1xf32>
    %48 = vector.shape_cast %47 : vector<1x16x1xf32> to vector<16x1xf32>
    %49 = arith.mulf %35, %35 : vector<16x128xf32>
    %cst_30 = arith.constant dense<0.000000e+00> : vector<16xf32>
    %50 = vector.multi_reduction <add>, %49, %cst_30 [1] : vector<16x128xf32> to vector<16xf32>
    %51 = vector.shape_cast %50 : vector<16xf32> to vector<16x1xf32>
    %52 = arith.addf %48, %51 : vector<16x1xf32>
    %c0_31 = arith.constant 0 : index
    %c0_32 = arith.constant 0 : index
    %c0_33 = arith.constant 0 : index
    %53 = vector.load %arg8[%c0_31, %c0_32, %c0_33] : memref<1x16x1xf32, #tpu.memory_space<vmem>>, vector<1x16x1xf32>
    %54 = vector.shape_cast %53 : vector<1x16x1xf32> to vector<16x1xf32>
    %55 = vector.shape_cast %52 : vector<16x1xf32> to vector<1x16x1xf32>
    tpu.vector_store %arg8[%c0_31, %c0_32, %c0_33], %55 {strides = array<i32>} : memref<1x16x1xf32, #tpu.memory_space<vmem>>, vector<1x16x1xf32>,
    return
  }
  func.func @transform_0(%arg0: i32, %arg1: i32, %arg2: i32) -> (i32, i32, i32) {
    %c1_i32 = arith.constant 1 : i32
    %0 = arith.muli %arg0, %c1_i32 : i32
    %1 = arith.addi %0, %arg2 : i32
    %c0_i32 = arith.constant 0 : i32
    %c0_i32_0 = arith.constant 0 : i32
    return %arg1, %c0_i32, %1 : i32, i32, i32
  }
  func.func @transform_1(%arg0: i32, %arg1: i32, %arg2: i32) -> (i32, i32, i32) {
    %c1_i32 = arith.constant 1 : i32
    %0 = arith.muli %arg0, %c1_i32 : i32
    %1 = arith.addi %0, %arg2 : i32
    %c1_i32_0 = arith.constant 1 : i32
    %2 = arith.addi %1, %c1_i32_0 : i32
    %c1_i32_1 = arith.constant 1 : i32
    %3 = arith.muli %2, %c1_i32_1 : i32
    %c0_i32 = arith.constant 0 : i32
    %c0_i32_2 = arith.constant 0 : i32
    return %arg1, %c0_i32, %3 : i32, i32, i32
  }
  func.func @transform_2(%arg0: i32, %arg1: i32, %arg2: i32) -> (i32, i32, i32) {
    %c0_i32 = arith.constant 0 : i32
    %c0_i32_0 = arith.constant 0 : i32
    %c0_i32_1 = arith.constant 0 : i32
    %c0_i32_2 = arith.constant 0 : i32
    return %c0_i32, %c0_i32_0, %c0_i32_1 : i32, i32, i32
  }
  func.func @transform_3(%arg0: i32, %arg1: i32, %arg2: i32) -> (i32, i32, i32) {
    %c1_i32 = arith.constant 1 : i32
    %0 = arith.muli %arg0, %c1_i32 : i32
    %1 = arith.addi %0, %arg2 : i32
    %c0_i32 = arith.constant 0 : i32
    %c0_i32_0 = arith.constant 0 : i32
    return %arg1, %c0_i32, %1 : i32, i32, i32
  }
  func.func @transform_4(%arg0: i32, %arg1: i32, %arg2: i32) -> (i32, i32, i32) {
    %c0_i32 = arith.constant 0 : i32
    %c0_i32_0 = arith.constant 0 : i32
    %c0_i32_1 = arith.constant 0 : i32
    return %arg0, %c0_i32, %c0_i32_0 : i32, i32, i32
  }
  func.func @transform_5(%arg0: i32, %arg1: i32, %arg2: i32) -> (i32, i32, i32) {
    %c0_i32 = arith.constant 0 : i32
    %c0_i32_0 = arith.constant 0 : i32
    %c0_i32_1 = arith.constant 0 : i32
    return %arg0, %c0_i32, %c0_i32_0 : i32, i32, i32
  }
}

</mosaic_0001>

<llo_original>
// kernel: tpu_custom_call.1
$region0: #{tpu_custom_call.1}
  #allocation0 [shape = 'u32[]', space=smem, size = 0x4, offset = 0x4, fixed_abs, tag = 'smem constant byte address 0x4 - core index']
  #allocation1 [shape = 'u32[144,128]{1,0:T(1,128)}', space=vmem, size = 0x12000, scoped, tag = 'internal scratch']
  %s0 = inlined_call_operand.hbm [shape: f32[2,16,256], index: 0, kind: input, shape index: {}]
  %s1 = inlined_call_operand.hbm [shape: f32[2,16,256], index: 1, kind: input, shape index: {}]
  %s2 = inlined_call_operand.hbm [shape: f32[3,16,16], index: 2, kind: input, shape index: {}]
  %s3 = inlined_call_operand.hbm [shape: f32[2,16,128], index: 3, kind: output, shape index: {0}]
  %s4 = inlined_call_operand.vmem [shape: f32[1,16,1], index: 4, kind: output, shape index: {1}]
  %s5 = inlined_call_operand.vmem [shape: f32[1,16,1], index: 5, kind: output, shape index: {2}]
  %6 = xla_tuple %s3, %s4, %s5
  %s7 = sld [smem:[#allocation0]]
  $region77: #{tpu_custom_call.1} parent=0
    _
  %s9 = ssub.s32 1, %s7
  %s10 = scalar_select 0, %s9, %s7
  $region1: #{tpu_custom_call.1} parent=0
    #allocation2 [shape = 'u8[16384]{0}', space=vmem, size = 0x4000, scoped, tag = 'input window, operand 0']
    #allocation3 [shape = 's32[2]{0}', space=sflag, size = 0x8, scoped, tag = 'scoped memory for tpu_custom_call.1']
    #allocation4 [shape = 's32[2]{0}', space=sflag, size = 0x8, scoped, tag = 'scoped memory for tpu_custom_call.1']
    #allocation5 [shape = 'u8[16384]{0}', space=vmem, size = 0x4000, scoped, tag = 'input window, operand 1']
    #allocation6 [shape = 's32[2]{0}', space=sflag, size = 0x8, scoped, tag = 'scoped memory for tpu_custom_call.1']
    #allocation7 [shape = 'u8[24576]{0}', space=vmem, size = 0x6000, scoped, tag = 'input window, operand 2, single buffered']
    #allocation8 [shape = 'u8[16384]{0}', space=vmem, size = 0x4000, scoped, tag = 'output window, operand 0']
    %11 = vsyncpa [#allocation3], 0
    %s12 = scalar_lea.sflag [#allocation3], 1
    %13 = vsyncpa %s12, 0
    %14 = vsyncpa [#allocation6], 0
    %s15 = scalar_lea.sflag [#allocation6], 1
    %16 = vsyncpa %s15, 0
    %17 = vsyncpa [#allocation4], 0
    %s18 = scalar_lea.sflag [#allocation4], 1
    %19 = vsyncpa %s18, 0
    loop: start=0, step=1, limit=4
    $region2: #{tpu_custom_call.1} parent=1 // loop_pre_header
      _
    $region3: #{tpu_custom_call.1} parent=1 // loop_header
      %s21 = sphi 0, %s25
      %p22 = scmp.ge.s32.totalorder %s21, 4
      %s28 = sphi 0, %s47
      %s29 = sphi 0, %s43
      %s30 = sphi 0, %s39
      %s31 = sphi 0, %s28
      %s32 = sphi 0, %s29
      %s33 = sphi 0, %s30
      %s34 = sphi 0, %s31
      %s35 = sphi 0, %s32
      %s36 = sphi 0, %s33
      %s54 = sphi 0, %s56
      %s57 = sphi 0, %s54
      %s58 = sphi 0, %s57
      %s74 = sphi 0, %s58
      %s86 = sphi 0, %s88
      %s89 = sphi 0, %s86
      %s90 = sphi 0, %s89
      %s106 = sphi 0, %s90
      %s110 = sphi 0, %s110
      %s112 = sphi 0, %s110
      %s113 = sphi 0, %s112
      %s127 = sphi 0, %s113
      %s137 = sphi 0, %s139
      %s140 = sphi 0, %s137
      %s141 = sphi 0, %s140
      %s157 = sphi 0, %s141
      %s163 = sphi 0, %s165
      %s166 = sphi 0, %s163
      %s167 = sphi 0, %s166
      %s183 = sphi 0, %s167
      %s189 = sphi 0, %s191
      %s192 = sphi 0, %s189
      %s193 = sphi 0, %s192
      %s209 = sphi 0, %s193
    $region4: #{tpu_custom_call.1} parent=1 // loop_header_branch
      %24 = sbr.rel (%p22) target = $region8
    $region5: #{tpu_custom_call.1} parent=1 // loop_body
      %s26 = ssub.s32 %s21, 1
      %s27 = ssub.s32 %s21, 2
      %s37 = sadd.s32 1, %s30
      %p38 = scmp.ge.s32.totalorder %s37, 1
      %s39 = scalar_select %p38, 0, %s37
      %s40 = sadd.s32 1, %s29
      %s41 = scalar_select %p38, %s40, %s29
      %p42 = scmp.ge.s32.totalorder %s41, 2
      %s43 = scalar_select %p42, 0, %s41
      %s44 = sadd.s32 1, %s28
      %s45 = scalar_select %p42, %s44, %s28
      %p46 = scmp.ge.s32.totalorder %s45, 1
      %s47 = scalar_select %p46, 0, %s45
      %s48 = sadd.s32 %s28, %s30
      %s49 = sadd.s32 %s47, %s39
      %s50 = ssub.s32 %s29, %s43
      %s51 = ssub.s32 %s48, %s49
      %s52 = sor.u32 %s50, %s51
      %p53 = scmp.eq.s32.totalorder %s52, 0
      %s55 = sadd.s32 %s54, 1
      %s56 = scalar_select %p53, %s54, %s55
      %p59 = pneg %p53
      %p60 = scmp.eq.s32.totalorder %s21, 1
      %p61 = por %p59, %p60
      %p62 = scmp.ne.s32.totalorder %s54, %s57
      %p63 = scmp.eq.s32.totalorder %s21, 0
      %p64 = por %p62, %p63
      %p65 = scmp.ne.s32.totalorder %s54, %s57
      %p66 = scmp.eq.s32.totalorder %s26, 1
      %p67 = por %p65, %p66
      %p68 = scmp.ne.s32.totalorder %s57, %s58
      %p69 = scmp.eq.s32.totalorder %s26, 0
      %p70 = por %p68, %p69
      %p71 = scmp.ne.s32.totalorder %s57, %s58
      %p72 = scmp.eq.s32.totalorder %s27, 1
      %p73 = por %p71, %p72
      %p75 = scmp.ne.s32.totalorder %s58, %s74
      %p76 = scmp.eq.s32.totalorder %s27, 0
      %p77 = por %p75, %p76
      %s78 = sadd.s32 %s28, %s30
      %s79 = sadd.s32 %s78, 1
      %s80 = sadd.s32 %s47, %s39
      %s81 = sadd.s32 %s80, 1
      %s82 = ssub.s32 %s29, %s43
      %s83 = ssub.s32 %s79, %s81
      %s84 = sor.u32 %s82, %s83
      %p85 = scmp.eq.s32.totalorder %s84, 0
      %s87 = sadd.s32 %s86, 1
      %s88 = scalar_select %p85, %s86, %s87
      %p91 = pneg %p85
      %p92 = scmp.eq.s32.totalorder %s21, 1
      %p93 = por %p91, %p92
      %p94 = scmp.ne.s32.totalorder %s86, %s89
      %p95 = scmp.eq.s32.totalorder %s21, 0
      %p96 = por %p94, %p95
      %p97 = scmp.ne.s32.totalorder %s86, %s89
      %p98 = scmp.eq.s32.totalorder %s26, 1
      %p99 = por %p97, %p98
      %p100 = scmp.ne.s32.totalorder %s89, %s90
      %p101 = scmp.eq.s32.totalorder %s26, 0
      %p102 = por %p100, %p101
      %p103 = scmp.ne.s32.totalorder %s89, %s90
      %p104 = scmp.eq.s32.totalorder %s27, 1
      %p105 = por %p103, %p104
      %p107 = scmp.ne.s32.totalorder %s90, %s106
      %p108 = scmp.eq.s32.totalorder %s27, 0
      %p109 = por %p107, %p108
      %s111 = sadd.s32 %s110, 1
      %p114 = scmp.eq.s32.totalorder %s21, 1
      %p115 = scmp.ne.s32.totalorder %s110, %s112
      %p116 = scmp.eq.s32.totalorder %s21, 0
      %p117 = por %p115, %p116
      %p118 = scmp.ne.s32.totalorder %s110, %s112
      %p119 = scmp.eq.s32.totalorder %s26, 1
      %p120 = por %p118, %p119
      %p121 = scmp.ne.s32.totalorder %s112, %s113
      %p122 = scmp.eq.s32.totalorder %s26, 0
      %p123 = por %p121, %p122
      %p124 = scmp.ne.s32.totalorder %s112, %s113
      %p125 = scmp.eq.s32.totalorder %s27, 1
      %p126 = por %p124, %p125
      %p128 = scmp.ne.s32.totalorder %s113, %s127
      %p129 = scmp.eq.s32.totalorder %s27, 0
      %p130 = por %p128, %p129
      %s131 = sadd.s32 %s28, %s30
      %s132 = sadd.s32 %s47, %s39
      %s133 = ssub.s32 %s29, %s43
      %s134 = ssub.s32 %s131, %s132
      %s135 = sor.u32 %s133, %s134
      %p136 = scmp.eq.s32.totalorder %s135, 0
      %s138 = sadd.s32 %s137, 1
      %s139 = scalar_select %p136, %s137, %s138
      %p142 = pneg %p136
      %p143 = scmp.eq.s32.totalorder %s21, 1
      %p144 = por %p142, %p143
      %p145 = scmp.ne.s32.totalorder %s137, %s140
      %p146 = scmp.eq.s32.totalorder %s21, 0
      %p147 = por %p145, %p146
      %p148 = scmp.ne.s32.totalorder %s137, %s140
      %p149 = scmp.eq.s32.totalorder %s26, 1
      %p150 = por %p148, %p149
      %p151 = scmp.ne.s32.totalorder %s140, %s141
      %p152 = scmp.eq.s32.totalorder %s26, 0
      %p153 = por %p151, %p152
      %p154 = scmp.ne.s32.totalorder %s140, %s141
      %p155 = scmp.eq.s32.totalorder %s27, 1
      %p156 = por %p154, %p155
      %p158 = scmp.ne.s32.totalorder %s141, %s157
      %p159 = scmp.eq.s32.totalorder %s27, 0
      %p160 = por %p158, %p159
      %s161 = ssub.s32 %s28, %s47
      %p162 = scmp.eq.s32.totalorder %s161, 0
      %s164 = sadd.s32 %s163, 1
      %s165 = scalar_select %p162, %s163, %s164
      %p168 = pneg %p162
      %p169 = scmp.eq.s32.totalorder %s21, 1
      %p170 = por %p168, %p169
      %p171 = scmp.ne.s32.totalorder %s163, %s166
      %p172 = scmp.eq.s32.totalorder %s21, 0
      %p173 = por %p171, %p172
      %p174 = scmp.ne.s32.totalorder %s163, %s166
      %p175 = scmp.eq.s32.totalorder %s26, 1
      %p176 = por %p174, %p175
      %p177 = scmp.ne.s32.totalorder %s166, %s167
      %p178 = scmp.eq.s32.totalorder %s26, 0
      %p179 = por %p177, %p178
      %p180 = scmp.ne.s32.totalorder %s166, %s167
      %p181 = scmp.eq.s32.totalorder %s27, 1
      %p182 = por %p180, %p181
      %p184 = scmp.ne.s32.totalorder %s167, %s183
      %p185 = scmp.eq.s32.totalorder %s27, 0
      %p186 = por %p184, %p185
      %s187 = ssub.s32 %s28, %s47
      %p188 = scmp.eq.s32.totalorder %s187, 0
      %s190 = sadd.s32 %s189, 1
      %s191 = scalar_select %p188, %s189, %s190
      %p194 = pneg %p188
      %p195 = scmp.eq.s32.totalorder %s21, 1
      %p196 = por %p194, %p195
      %p197 = scmp.ne.s32.totalorder %s189, %s192
      %p198 = scmp.eq.s32.totalorder %s21, 0
      %p199 = por %p197, %p198
      %p200 = scmp.ne.s32.totalorder %s189, %s192
      %p201 = scmp.eq.s32.totalorder %s26, 1
      %p202 = por %p200, %p201
      %p203 = scmp.ne.s32.totalorder %s192, %s193
      %p204 = scmp.eq.s32.totalorder %s26, 0
      %p205 = por %p203, %p204
      %p206 = scmp.ne.s32.totalorder %s192, %s193
      %p207 = scmp.eq.s32.totalorder %s27, 1
      %p208 = por %p206, %p207
      %p210 = scmp.ne.s32.totalorder %s193, %s209
      %p211 = scmp.eq.s32.totalorder %s27, 0
      %p212 = por %p210, %p211
      %p213 = scmp.le.s32.totalorder 1, %s21
      %p214 = scmp.lt.s32.totalorder %s21, 3
      %p215 = pnand %p213, %p214
      %p216 = pneg %p215
      // Predicated region
      $region9: #{tpu_custom_call.1} parent=5 // pred_check
        _
      $region10: #{tpu_custom_call.1} parent=5 // pred_check_branch
        %218 = sbr.rel (%p215) target = $region12
      $region11: #{tpu_custom_call.1} parent=5 // pred_region
        %s219 = ssub.s32 %s21, 1
        // Predicated region
        $region13: #{tpu_custom_call.1} parent=11 // pred_check
          %p220 = pneg %p123
        $region14: #{tpu_custom_call.1} parent=11 // pred_check_branch
          %222 = sbr.rel (%p220) target = $region16
        $region15: #{tpu_custom_call.1} parent=11 // pred_region
          %s224 = ssub.s32 768, 768
          %225 = vsyncadd [#allocation6], %s224
          %s226 = sshll.u32 [#allocation7], 4
          %s227 = int_to_ptr.vmem [resolvable:$true] %s226
          %232 = dma.hbm_to_vmem [thread:$0]  %s2, 768, %s227, [#allocation6], 128, 128, 8
        $region16: #{tpu_custom_call.1} parent=11 // pred_fallthru
          _
      $region12: #{tpu_custom_call.1} parent=5 // pred_fallthru
        _
      %p233 = scmp.lt.s32.totalorder %s21, 2
      // Predicated region
      $region17: #{tpu_custom_call.1} parent=5 // pred_check
        %p234 = pneg %p233
      $region18: #{tpu_custom_call.1} parent=5 // pred_check_branch
        %236 = sbr.rel (%p234) target = $region20
      $region19: #{tpu_custom_call.1} parent=5 // pred_region
        // Predicated region
        $region21: #{tpu_custom_call.1} parent=19 // pred_check
          %p237 = pneg %p64
        $region22: #{tpu_custom_call.1} parent=19 // pred_check_branch
          %239 = sbr.rel (%p237) target = $region24
        $region23: #{tpu_custom_call.1} parent=19 // pred_region
          %s240 = sand.u32 %s54, 1
          %s241 = scalar_lea.sflag [#allocation3], %s240
          %s242 = sand.u32 %s54, 1
          %s243 = smul.addr %s242, 16
          %s244 = scalar_lea.vmem [#allocation2], %s243
          %s245 = sadd.s32 %s28, %s30
          %s247 = ssub.s32 256, 256
          %248 = vsyncadd %s241, %s247
          %s249 = smul.addr %s29, 4
          %s250 = sadd.s32 %s245, %s249
          %s251 = smul.addr %s250, 128
          %s252 = scalar_lea.hbm %s0, %s251
          %s253 = sshll.u32 %s244, 4
          %s254 = int_to_ptr.vmem [resolvable:$true] %s253
          %259 = dma.hbm_to_vmem [thread:$0]  %s252, 256, %s254, %s241, 256, 128, 8
        $region24: #{tpu_custom_call.1} parent=19 // pred_fallthru
          _
        // Predicated region
        $region25: #{tpu_custom_call.1} parent=19 // pred_check
          %p260 = pneg %p96
        $region26: #{tpu_custom_call.1} parent=19 // pred_check_branch
          %262 = sbr.rel (%p260) target = $region28
        $region27: #{tpu_custom_call.1} parent=19 // pred_region
          %s263 = sand.u32 %s21, 1
          %s264 = scalar_lea.sflag [#allocation6], %s263
          %s265 = sand.u32 %s86, 1
          %s266 = smul.addr %s265, 16
          %s267 = scalar_lea.vmem [#allocation5], %s266
          %s268 = sadd.s32 %s28, %s30
          %s269 = sadd.s32 %s268, 1
          %s271 = ssub.s32 256, 256
          %272 = vsyncadd %s264, %s271
          %s273 = smul.addr %s29, 4
          %s274 = sadd.s32 %s269, %s273
          %s275 = smul.addr %s274, 128
          %s276 = scalar_lea.hbm %s1, %s275
          %s277 = sshll.u32 %s267, 4
          %s278 = int_to_ptr.vmem [resolvable:$true] %s277
          %283 = dma.hbm_to_vmem [thread:$0]  %s276, 256, %s278, %s264, 256, 128, 8
        $region28: #{tpu_custom_call.1} parent=19 // pred_fallthru
          _
      $region20: #{tpu_custom_call.1} parent=5 // pred_fallthru
        _
      %p284 = scmp.le.s32.totalorder 1, %s21
      %p285 = scmp.lt.s32.totalorder %s21, 3
      %p286 = pnand %p284, %p285
      %p287 = pneg %p286
      // Predicated region
      $region29: #{tpu_custom_call.1} parent=5 // pred_check
        _
      $region30: #{tpu_custom_call.1} parent=5 // pred_check_branch
        %289 = sbr.rel (%p286) target = $region32
      $region31: #{tpu_custom_call.1} parent=5 // pred_region
        %s290 = ssub.s32 %s21, 1
        %s291 = sand.u32 %s57, 1
        %s292 = scalar_lea.sflag [#allocation3], %s291
        %s293 = sand.u32 %s57, 1
        %s294 = smul.addr %s293, 16
        %s295 = scalar_lea.vmem [#allocation2], %s294
        // Predicated region
        $region33: #{tpu_custom_call.1} parent=31 // pred_check
          %p296 = pneg %p70
        $region34: #{tpu_custom_call.1} parent=31 // pred_check_branch
          %298 = sbr.rel (%p296) target = $region36
        $region35: #{tpu_custom_call.1} parent=31 // pred_region
          %299 = dma.done %s292, 256
        $region36: #{tpu_custom_call.1} parent=31 // pred_fallthru
          _
        %s300 = sand.u32 %s26, 1
        %s301 = scalar_lea.sflag [#allocation6], %s300
        %s302 = sand.u32 %s89, 1
        %s303 = smul.addr %s302, 16
        %s304 = scalar_lea.vmem [#allocation5], %s303
        // Predicated region
        $region37: #{tpu_custom_call.1} parent=31 // pred_check
          %p305 = pneg %p102
        $region38: #{tpu_custom_call.1} parent=31 // pred_check_branch
          %307 = sbr.rel (%p305) target = $region40
        $region39: #{tpu_custom_call.1} parent=31 // pred_region
          %308 = dma.done %s301, 256
        $region40: #{tpu_custom_call.1} parent=31 // pred_fallthru
          _
        // Predicated region
        $region41: #{tpu_custom_call.1} parent=31 // pred_check
          %p309 = pneg %p123
        $region42: #{tpu_custom_call.1} parent=31 // pred_check_branch
          %311 = sbr.rel (%p309) target = $region44
        $region43: #{tpu_custom_call.1} parent=31 // pred_region
          %312 = dma.done [#allocation6], 768
        $region44: #{tpu_custom_call.1} parent=31 // pred_fallthru
          _
        %s313 = sand.u32 %s57, 1
        %s314 = scalar_lea.sflag [#allocation3], %s313
        %s315 = sand.u32 %s57, 1
        %s316 = smul.addr %s315, 16
        %s317 = scalar_lea.vmem [#allocation2], %s316
        %p318 = pneg %p70
        %p319 = pneg %p67
        %s320 = sand.u32 %s26, 1
        %s321 = scalar_lea.sflag [#allocation6], %s320
        %s322 = sand.u32 %s89, 1
        %s323 = smul.addr %s322, 16
        %s324 = scalar_lea.vmem [#allocation5], %s323
        %p325 = pneg %p102
        %p326 = pneg %p99
        %p327 = pneg %p123
        %p328 = pneg %p120
        %p329 = pneg %p153
        %p330 = pneg %p150
        %s331 = sand.u32 %s140, 1
        %s332 = scalar_lea.sflag [#allocation4], %s331
        %s333 = sand.u32 %s140, 1
        %s334 = smul.addr %s333, 16
        %s335 = scalar_lea.vmem [#allocation8], %s334
        %p336 = pneg %p179
        %p337 = pneg %p176
        %p338 = scmp.lt.s32.totalorder %s31, 0
        %s339 = scalar_select %p338, %s31, 0
        %s340 = smul.addr %s339, 2
        %s341 = smul.addr %s340, 8
        %s342 = scalar_lea.vmem %s4, %s341
        %p343 = pneg %p205
        %p344 = pneg %p202
        %p345 = scmp.lt.s32.totalorder %s31, 0
        %s346 = scalar_select %p345, %s31, 0
        %s347 = smul.addr %s346, 2
        %s348 = smul.addr %s347, 8
        %s349 = scalar_lea.vmem %s5, %s348
        %s350 = sadd.s32 %s31, %s33
        %s351 = sadd.s32 %s31, %s33
        %s352 = sadd.s32 %s351, 1
        %s353 = sadd.s32 %s31, %s33
        %p354 = scmp.lt.s32.totalorder %s31, 0
        %s355 = scalar_select %p354, %s31, 0
        %s356 = smul.addr %s355, 2
        %s357 = smul.addr %s356, 8
        %s358 = scalar_lea.vmem %s4, %s357
        %p359 = scmp.lt.s32.totalorder %s31, 0
        %s360 = scalar_select %p359, %s31, 0
        %s361 = smul.addr %s360, 2
        %s362 = smul.addr %s361, 8
        %s363 = scalar_lea.vmem %s5, %s362
        %p364 = scmp.eq.s32.totalorder %s32, 0
        %p365 = scmp.eq.s32.totalorder %s33, 0
        %p366 = pnand %p364, %p365
        %p367 = pneg %p366
        // Predicated region
        $region45: #{tpu_custom_call.1} parent=31 // pred_check
          _
        $region46: #{tpu_custom_call.1} parent=31 // pred_check_branch
          %369 = sbr.rel (%p366) target = $region48
        $region47: #{tpu_custom_call.1} parent=31 // pred_region
          %vm370 = vcmask 7168
          %371 = vst.msk [vmem:[%s358] sm:$0xff] %vm370, 0.0
          %372 = vst.msk [vmem:[%s358 + $0x8] sm:$0xff] %vm370, 0.0
          %373 = vst.msk [vmem:[%s363] sm:$0xff] %vm370, 0.0
          %374 = vst.msk [vmem:[%s363 + $0x8] sm:$0xff] %vm370, 0.0
        $region48: #{tpu_custom_call.1} parent=31 // pred_fallthru
          _
        %v375 = vld [vmem:[%s295] sm:$0xff]
        %v376 = vld [vmem:[%s295 + $0x8] sm:$0xff]
        %v377 = vld [vmem:[%s304] sm:$0xff]
        %v378 = vld [vmem:[%s304 + $0x8] sm:$0xff]
        %v379 = vld [vmem:[#allocation7] sm:$0xff]
        %v380 = vld [vmem:[#allocation7 + $0x8] sm:$0xff]
        %s381 = scalar_lea.vmem [#allocation7], 16
        %v382 = vld [vmem:[%s381] sm:$0xff]
        %v383 = vld [vmem:[%s381 + $0x8] sm:$0xff]
        %388 = vrot.lane.b32.xlu0 %v375, 127
        %v389 = vpop.permute.xlu0 %388
        %390 = vrot.lane.b32.xlu0 %v377, 127
        %v391 = vpop.permute.xlu0 %390
        %392 = vrot.lane.b32.xlu0 %v376, 127
        %v393 = vpop.permute.xlu0 %392
        %394 = vrot.lane.b32.xlu0 %v378, 127
        %v395 = vpop.permute.xlu0 %394
        %vm396 = vcmask 1039360
        %v397 = vsel %vm396, %v389, %v391
        %v398 = vsel %vm396, %v393, %v395
        %vm401 = vcmask 130048
        %v403 = vsel %vm401, %v382, 0
        %v406 = vsel %vm401, %v383, 0
        %408 = vmatprep.subr.mxu0 0.0
        %409 = vmatpush1.msra.mxu0 %v397
        %410 = vmatprep.subr.mxu0 0.0
        %411 = vmatpush1.msra.mxu0 %v398
        %412 = vmatprep.subr.mxu0 0.0
        %413 = vmatpush1.msra.mxu0 0.0
        %414 = vmatprep.subr.mxu0 0.0
        %415 = vmatpush1.msra.mxu0 0.0
        %416 = vmatprep.subr.mxu0 0.0
        %417 = vmatpush1.msra.mxu0 0.0
        %418 = vmatprep.subr.mxu0 0.0
        %419 = vmatpush1.msra.mxu0 0.0
        %420 = vmatprep.subr.mxu0 0.0
        %421 = vmatpush1.msra.mxu0 0.0
        %422 = vmatprep.subr.mxu0 0.0
        %423 = vmatpush1.msra.mxu0 0.0
        %424 = vmatprep.subr.mxu0 0.0
        %425 = vmatpush1.msra.mxu0 0.0
        %426 = vmatprep.subr.mxu0 0.0
        %427 = vmatpush1.msra.mxu0 0.0
        %428 = vmatprep.subr.mxu0 0.0
        %429 = vmatpush1.msra.mxu0 0.0
        %430 = vmatprep.subr.mxu0 0.0
        %431 = vmatpush1.msra.mxu0 0.0
        %432 = vmatprep.subr.mxu0 0.0
        %433 = vmatpush1.msra.mxu0 0.0
        %434 = vmatprep.subr.mxu0 0.0
        %435 = vmatpush1.msra.mxu0 0.0
        %436 = vmatprep.subr.mxu0 0.0
        %437 = vmatpush1.msra.mxu0 0.0
        %438 = vmatprep.subr.mxu0 0.0
        %439 = vmatpush1.msra.mxu0 0.0
        %440 = vmatprep.subr.mxu0 0.0
        %441 = vmatpush1.msra.mxu0 0.0
        %442 = vmatprep.subr.mxu0 0.0
        %443 = vmatpush1.msra.mxu0 0.0
        %444 = vmatprep.subr.mxu0 0.0
        %445 = vmatpush1.msra.mxu0 0.0
        %446 = vmatprep.subr.mxu0 0.0
        %447 = vmatpush1.msra.mxu0 0.0
        %448 = vmatprep.subr.mxu0 0.0
        %449 = vmatpush1.msra.mxu0 0.0
        %450 = vmatprep.subr.mxu0 0.0
        %451 = vmatpush1.msra.mxu0 0.0
        %452 = vmatprep.subr.mxu0 0.0
        %453 = vmatpush1.msra.mxu0 0.0
        %454 = vmatprep.subr.mxu0 0.0
        %455 = vmatpush1.msra.mxu0 0.0
        %456 = vmatprep.subr.mxu0 0.0
        %457 = vmatpush1.msra.mxu0 0.0
        %458 = vmatprep.subr.mxu0 0.0
        %459 = vmatpush1.msra.mxu0 0.0
        %460 = vmatprep.subr.mxu0 0.0
        %461 = vmatpush1.msra.mxu0 0.0
        %462 = vmatprep.subr.mxu0 0.0
        %463 = vmatpush1.msra.mxu0 0.0
        %464 = vmatprep.subr.mxu0 0.0
        %465 = vmatpush1.msra.mxu0 0.0
        %466 = vmatprep.subr.mxu0 0.0
        %467 = vmatpush1.msra.mxu0 0.0
        %468 = vmatprep.subr.mxu0 0.0
        %469 = vmatpush1.msra.mxu0 0.0
        %470 = vmatprep.subr.mxu0 0.0
        %471 = vmatpush1.msra.mxu0 0.0
        %472 = vmatprep.mubr.f32.mxu0 0.0
        %473 = vmatmul.mubr.f32.gmra.mrb[0].mxu0 %v403
        %v474 = vpop.f32.mrb[0].mxu0
        %v475 = vadd.f32 0.0, %v474
        %v476 = vpop.f32.mrb[0].mxu0
        %477 = vmatprep.mubr.f32.mxu0 0.0
        %478 = vmatmul.mubr.f32.gmra.mrb[0].mxu0 %v406
        %v479 = vpop.f32.mrb[0].mxu0
        %v480 = vadd.f32 0.0, %v479
        %v481 = vpop.f32.mrb[0].mxu0
        %482 = vdwg.mxu0
        %v484 = vsel %vm401, %v379, 0
        %v487 = vsel %vm401, %v380, 0
        %489 = vmatprep.subr.mxu0 0.0
        %490 = vmatpush1.msra.mxu0 %v375
        %491 = vmatprep.subr.mxu0 0.0
        %492 = vmatpush1.msra.mxu0 %v376
        %493 = vmatprep.subr.mxu0 0.0
        %494 = vmatpush1.msra.mxu0 0.0
        %495 = vmatprep.subr.mxu0 0.0
        %496 = vmatpush1.msra.mxu0 0.0
        %497 = vmatprep.subr.mxu0 0.0
        %498 = vmatpush1.msra.mxu0 0.0
        %499 = vmatprep.subr.mxu0 0.0
        %500 = vmatpush1.msra.mxu0 0.0
        %501 = vmatprep.subr.mxu0 0.0
        %502 = vmatpush1.msra.mxu0 0.0
        %503 = vmatprep.subr.mxu0 0.0
        %504 = vmatpush1.msra.mxu0 0.0
        %505 = vmatprep.subr.mxu0 0.0
        %506 = vmatpush1.msra.mxu0 0.0
        %507 = vmatprep.subr.mxu0 0.0
        %508 = vmatpush1.msra.mxu0 0.0
        %509 = vmatprep.subr.mxu0 0.0
        %510 = vmatpush1.msra.mxu0 0.0
        %511 = vmatprep.subr.mxu0 0.0
        %512 = vmatpush1.msra.mxu0 0.0
        %513 = vmatprep.subr.mxu0 0.0
        %514 = vmatpush1.msra.mxu0 0.0
        %515 = vmatprep.subr.mxu0 0.0
        %516 = vmatpush1.msra.mxu0 0.0
        %517 = vmatprep.subr.mxu0 0.0
        %518 = vmatpush1.msra.mxu0 0.0
        %519 = vmatprep.subr.mxu0 0.0
        %520 = vmatpush1.msra.mxu0 0.0
        %521 = vmatprep.subr.mxu0 0.0
        %522 = vmatpush1.msra.mxu0 0.0
        %523 = vmatprep.subr.mxu0 0.0
        %524 = vmatpush1.msra.mxu0 0.0
        %525 = vmatprep.subr.mxu0 0.0
        %526 = vmatpush1.msra.mxu0 0.0
        %527 = vmatprep.subr.mxu0 0.0
        %528 = vmatpush1.msra.mxu0 0.0
        %529 = vmatprep.subr.mxu0 0.0
        %530 = vmatpush1.msra.mxu0 0.0
        %531 = vmatprep.subr.mxu0 0.0
        %532 = vmatpush1.msra.mxu0 0.0
        %533 = vmatprep.subr.mxu0 0.0
        %534 = vmatpush1.msra.mxu0 0.0
        %535 = vmatprep.subr.mxu0 0.0
        %536 = vmatpush1.msra.mxu0 0.0
        %537 = vmatprep.subr.mxu0 0.0
        %538 = vmatpush1.msra.mxu0 0.0
        %539 = vmatprep.subr.mxu0 0.0
        %540 = vmatpush1.msra.mxu0 0.0
        %541 = vmatprep.subr.mxu0 0.0
        %542 = vmatpush1.msra.mxu0 0.0
        %543 = vmatprep.subr.mxu0 0.0
        %544 = vmatpush1.msra.mxu0 0.0
        %545 = vmatprep.subr.mxu0 0.0
        %546 = vmatpush1.msra.mxu0 0.0
        %547 = vmatprep.subr.mxu0 0.0
        %548 = vmatpush1.msra.mxu0 0.0
        %549 = vmatprep.subr.mxu0 0.0
        %550 = vmatpush1.msra.mxu0 0.0
        %551 = vmatprep.subr.mxu0 0.0
        %552 = vmatpush1.msra.mxu0 0.0
        %553 = vmatprep.mubr.f32.mxu0 0.0
        %554 = vmatmul.mubr.f32.gmra.mrb[0].mxu0 %v484
        %v555 = vpop.f32.mrb[0].mxu0
        %v556 = vadd.f32 %v475, %v555
        %v557 = vpop.f32.mrb[0].mxu0
        %558 = vmatprep.mubr.f32.mxu0 0.0
        %559 = vmatmul.mubr.f32.gmra.mrb[0].mxu0 %v487
        %v560 = vpop.f32.mrb[0].mxu0
        %v561 = vadd.f32 %v480, %v560
        %v562 = vpop.f32.mrb[0].mxu0
        %563 = vdwg.mxu0
        %s564 = scalar_lea.vmem [#allocation7], 32
        %v565 = vld [vmem:[%s564] sm:$0xff]
        %v566 = vld [vmem:[%s564 + $0x8] sm:$0xff]
        %567 = vrot.lane.b32.xlu0 %v375, 126
        %v568 = vpop.permute.xlu0 %567
        %569 = vrot.lane.b32.xlu0 %v377, 126
        %v570 = vpop.permute.xlu0 %569
        %571 = vrot.lane.b32.xlu0 %v376, 126
        %v572 = vpop.permute.xlu0 %571
        %573 = vrot.lane.b32.xlu0 %v378, 126
        %v574 = vpop.permute.xlu0 %573
        %vm575 = vcmask 1031168
        %v576 = vsel %vm575, %v568, %v570
        %v577 = vsel %vm575, %v572, %v574
        %v581 = vsel %vm401, %v565, 0
        %v584 = vsel %vm401, %v566, 0
        %586 = vmatprep.subr.mxu0 0.0
        %587 = vmatpush1.msra.mxu0 %v576
        %588 = vmatprep.subr.mxu0 0.0
        %589 = vmatpush1.msra.mxu0 %v577
        %590 = vmatprep.subr.mxu0 0.0
        %591 = vmatpush1.msra.mxu0 0.0
        %592 = vmatprep.subr.mxu0 0.0
        %593 = vmatpush1.msra.mxu0 0.0
        %594 = vmatprep.subr.mxu0 0.0
        %595 = vmatpush1.msra.mxu0 0.0
        %596 = vmatprep.subr.mxu0 0.0
        %597 = vmatpush1.msra.mxu0 0.0
        %598 = vmatprep.subr.mxu0 0.0
        %599 = vmatpush1.msra.mxu0 0.0
        %600 = vmatprep.subr.mxu0 0.0
        %601 = vmatpush1.msra.mxu0 0.0
        %602 = vmatprep.subr.mxu0 0.0
        %603 = vmatpush1.msra.mxu0 0.0
        %604 = vmatprep.subr.mxu0 0.0
        %605 = vmatpush1.msra.mxu0 0.0
        %606 = vmatprep.subr.mxu0 0.0
        %607 = vmatpush1.msra.mxu0 0.0
        %608 = vmatprep.subr.mxu0 0.0
        %609 = vmatpush1.msra.mxu0 0.0
        %610 = vmatprep.subr.mxu0 0.0
        %611 = vmatpush1.msra.mxu0 0.0
        %612 = vmatprep.subr.mxu0 0.0
        %613 = vmatpush1.msra.mxu0 0.0
        %614 = vmatprep.subr.mxu0 0.0
        %615 = vmatpush1.msra.mxu0 0.0
        %616 = vmatprep.subr.mxu0 0.0
        %617 = vmatpush1.msra.mxu0 0.0
        %618 = vmatprep.subr.mxu0 0.0
        %619 = vmatpush1.msra.mxu0 0.0
        %620 = vmatprep.subr.mxu0 0.0
        %621 = vmatpush1.msra.mxu0 0.0
        %622 = vmatprep.subr.mxu0 0.0
        %623 = vmatpush1.msra.mxu0 0.0
        %624 = vmatprep.subr.mxu0 0.0
        %625 = vmatpush1.msra.mxu0 0.0
        %626 = vmatprep.subr.mxu0 0.0
        %627 = vmatpush1.msra.mxu0 0.0
        %628 = vmatprep.subr.mxu0 0.0
        %629 = vmatpush1.msra.mxu0 0.0
        %630 = vmatprep.subr.mxu0 0.0
        %631 = vmatpush1.msra.mxu0 0.0
        %632 = vmatprep.subr.mxu0 0.0
        %633 = vmatpush1.msra.mxu0 0.0
        %634 = vmatprep.subr.mxu0 0.0
        %635 = vmatpush1.msra.mxu0 0.0
        %636 = vmatprep.subr.mxu0 0.0
        %637 = vmatpush1.msra.mxu0 0.0
        %638 = vmatprep.subr.mxu0 0.0
        %639 = vmatpush1.msra.mxu0 0.0
        %640 = vmatprep.subr.mxu0 0.0
        %641 = vmatpush1.msra.mxu0 0.0
        %642 = vmatprep.subr.mxu0 0.0
        %643 = vmatpush1.msra.mxu0 0.0
        %644 = vmatprep.subr.mxu0 0.0
        %645 = vmatpush1.msra.mxu0 0.0
        %646 = vmatprep.subr.mxu0 0.0
        %647 = vmatpush1.msra.mxu0 0.0
        %648 = vmatprep.subr.mxu0 0.0
        %649 = vmatpush1.msra.mxu0 0.0
        %650 = vmatprep.mubr.f32.mxu0 0.0
        %651 = vmatmul.mubr.f32.gmra.mrb[0].mxu0 %v581
        %v652 = vpop.f32.mrb[0].mxu0
        %v653 = vadd.f32 0.0, %v652
        %v654 = vpop.f32.mrb[0].mxu0
        %655 = vmatprep.mubr.f32.mxu0 0.0
        %656 = vmatmul.mubr.f32.gmra.mrb[0].mxu0 %v584
        %v657 = vpop.f32.mrb[0].mxu0
        %v658 = vadd.f32 0.0, %v657
        %v659 = vpop.f32.mrb[0].mxu0
        %660 = vdwg.mxu0
        %v661 = vadd.f32 %v556, %v653
        %v662 = vadd.f32 %v561, %v658
        %s663 = sadd.s32 %s31, %s33
        %s664 = smul.u32 %s663, 128
        %v665 = vlaneseq
        %v666 = vand.u32 %v665, 127
        %v667 = vstv %s664
        %v668 = vadd.s32 %v667, %v666
        %vm669 = vcmp.lt.s32.totalorder %v668, 16
        %v670 = vsel %vm669, 1, 0
        %vm671 = vcmp.eq.s32.totalorder %v670, 1
        %v672 = vsel %vm671, %v661, 0.0
        %v673 = vsel %vm671, %v662, 0.0
        %674 = vst [vmem:[%s335] sm:$0xff] %v672
        %675 = vst [vmem:[%s335 + $0x8] sm:$0xff] %v673
        %v676 = vld [vmem:[%s358] sm:$0xff]
        %v677 = vld [vmem:[%s358 + $0x8] sm:$0xff]
        %678 = vadd.xlane.f32.xlu0 %v672
        %v679 = vpop.xlane.xlu0 %678
        %680 = vadd.xlane.f32.xlu0 %v673
        %v681 = vpop.xlane.xlu0 %680
        %v682 = vadd.f32 %v676, %v679
        %v683 = vadd.f32 %v677, %v681
        %vm684 = vcmask 7168
        %685 = vst.msk [vmem:[%s358] sm:$0xff] %vm684, %v682
        %686 = vst.msk [vmem:[%s358 + $0x8] sm:$0xff] %vm684, %v683
        %v687 = vld [vmem:[%s363] sm:$0xff]
        %v688 = vld [vmem:[%s363 + $0x8] sm:$0xff]
        %v689 = vmul.f32 %v672, %v672
        %v690 = vmul.f32 %v673, %v673
        %691 = vadd.xlane.f32.xlu0 %v689
        %v692 = vpop.xlane.xlu0 %691
        %693 = vadd.xlane.f32.xlu0 %v690
        %v694 = vpop.xlane.xlu0 %693
        %v695 = vadd.f32 %v687, %v692
        %v696 = vadd.f32 %v688, %v694
        %697 = vst.msk [vmem:[%s363] sm:$0xff] %vm684, %v695
        %698 = vst.msk [vmem:[%s363 + $0x8] sm:$0xff] %vm684, %v696
        %s699 = sand.u32 %s140, 1
        %s700 = scalar_lea.sflag [#allocation4], %s699
        %s701 = sand.u32 %s140, 1
        %s702 = smul.addr %s701, 16
        %s703 = scalar_lea.vmem [#allocation8], %s702
        %p704 = scmp.lt.s32.totalorder %s31, 0
        %s705 = scalar_select %p704, %s31, 0
        %s706 = smul.addr %s705, 2
        %s707 = smul.addr %s706, 8
        %s708 = scalar_lea.vmem %s4, %s707
        %p709 = scmp.lt.s32.totalorder %s31, 0
        %s710 = scalar_select %p709, %s31, 0
        %s711 = smul.addr %s710, 2
        %s712 = smul.addr %s711, 8
        %s713 = scalar_lea.vmem %s5, %s712
        // Predicated region
        $region49: #{tpu_custom_call.1} parent=31 // pred_check
          %p714 = pneg %p150
        $region50: #{tpu_custom_call.1} parent=31 // pred_check_branch
          %716 = sbr.rel (%p714) target = $region52
        $region51: #{tpu_custom_call.1} parent=31 // pred_region
          %s717 = sadd.s32 %s31, %s33
          %s719 = ssub.s32 256, 256
          %720 = vsyncadd %s700, %s719
          %s721 = smul.addr %s32, 2
          %s722 = sadd.s32 %s717, %s721
          %s723 = smul.addr %s722, 128
          %s724 = scalar_lea.hbm %s3, %s723
          %s725 = sshll.u32 %s703, 4
          %s726 = int_to_ptr.vmem [resolvable:$true] %s725
          %731 = dma.vmem_to_hbm [thread:$0]  %s726, 256, %s724, %s700, 128, 128, 8
        $region52: #{tpu_custom_call.1} parent=31 // pred_fallthru
          _
        // Predicated region
        $region53: #{tpu_custom_call.1} parent=31 // pred_check
          %p732 = pneg %p176
        $region54: #{tpu_custom_call.1} parent=31 // pred_check_branch
          %734 = sbr.rel (%p732) target = $region56
        $region55: #{tpu_custom_call.1} parent=31 // pred_region
          _
        $region56: #{tpu_custom_call.1} parent=31 // pred_fallthru
          _
        // Predicated region
        $region57: #{tpu_custom_call.1} parent=31 // pred_check
          %p735 = pneg %p202
        $region58: #{tpu_custom_call.1} parent=31 // pred_check_branch
          %737 = sbr.rel (%p735) target = $region60
        $region59: #{tpu_custom_call.1} parent=31 // pred_region
          _
        $region60: #{tpu_custom_call.1} parent=31 // pred_fallthru
          _
        // Predicated region
        $region61: #{tpu_custom_call.1} parent=31 // pred_check
          %p738 = pneg %p176
        $region62: #{tpu_custom_call.1} parent=31 // pred_check_branch
          %740 = sbr.rel (%p738) target = $region64
        $region63: #{tpu_custom_call.1} parent=31 // pred_region
          %p741 = scmp.lt.s32.totalorder %s31, 0
          %s742 = scalar_select %p741, %s31, 0
          %s743 = smul.addr %s742, 2
          %s744 = smul.addr %s743, 8
          %s745 = scalar_lea.vmem %s4, %s744
        $region64: #{tpu_custom_call.1} parent=31 // pred_fallthru
          _
        // Predicated region
        $region65: #{tpu_custom_call.1} parent=31 // pred_check
          %p746 = pneg %p202
        $region66: #{tpu_custom_call.1} parent=31 // pred_check_branch
          %748 = sbr.rel (%p746) target = $region68
        $region67: #{tpu_custom_call.1} parent=31 // pred_region
          %p749 = scmp.lt.s32.totalorder %s31, 0
          %s750 = scalar_select %p749, %s31, 0
          %s751 = smul.addr %s750, 2
          %s752 = smul.addr %s751, 8
          %s753 = scalar_lea.vmem %s5, %s752
        $region68: #{tpu_custom_call.1} parent=31 // pred_fallthru
          _
      $region32: #{tpu_custom_call.1} parent=5 // pred_fallthru
        _
      %p754 = scmp.le.s32.totalorder 2, %s21
      // Predicated region
      $region69: #{tpu_custom_call.1} parent=5 // pred_check
        %p755 = pneg %p754
      $region70: #{tpu_custom_call.1} parent=5 // pred_check_branch
        %757 = sbr.rel (%p755) target = $region72
      $region71: #{tpu_custom_call.1} parent=5 // pred_region
        %s758 = ssub.s32 %s21, 2
        // Predicated region
        $region73: #{tpu_custom_call.1} parent=71 // pred_check
          %p759 = pneg %p156
        $region74: #{tpu_custom_call.1} parent=71 // pred_check_branch
          %761 = sbr.rel (%p759) target = $region76
        $region75: #{tpu_custom_call.1} parent=71 // pred_region
          %s762 = sand.u32 %s141, 1
          %s763 = scalar_lea.sflag [#allocation4], %s762
          %s764 = sand.u32 %s141, 1
          %s765 = smul.addr %s764, 16
          %s766 = scalar_lea.vmem [#allocation8], %s765
          %767 = dma.done %s763, 256
        $region76: #{tpu_custom_call.1} parent=71 // pred_fallthru
          _
      $region72: #{tpu_custom_call.1} parent=5 // pred_fallthru
        _
    $region6: #{tpu_custom_call.1} parent=1 // loop_footer
      %s25 = sadd.s32 1, %s21
    $region7: #{tpu_custom_call.1} parent=1 // loop_footer_branch
      %20 = sbr.rel target = $region3
    $region8: #{tpu_custom_call.1} parent=1 // loop_exit
      _
    %768 = vsyncpa [#allocation3], 1
    %s769 = scalar_lea.sflag [#allocation3], 1
    %770 = vsyncpa %s769, 1
    %771 = vsyncpa [#allocation6], 1
    %s772 = scalar_lea.sflag [#allocation6], 1
    %773 = vsyncpa %s772, 1
    %774 = vsyncpa [#allocation4], 1
    %s775 = scalar_lea.sflag [#allocation4], 1
    %776 = vsyncpa %s775, 1

</llo_original>
